<compile_context>
chip_gen: v5e
topology: v5e:2x2
jax: 0.10.0
libtpu: 0.0.40
codegen_flags: <defaults>
</compile_context>

<pallas_src>
import functools

import numpy as np
import jax
import jax.numpy as jnp
from jax.experimental import pallas as pl
from jax.experimental.pallas import tpu as pltpu


def _round_up(x, n):
    return ((x + n - 1) // n) * n


def _make_sensing_kernel(nk):
    """(tm, tk) f32 lhs tile x (tk, m_pad) bf16 weight tile -> (tm, m_pad) f32."""

    def kernel(x_ref, w_ref, o_ref):
        part = jnp.dot(
            x_ref[...].astype(jnp.bfloat16),   # VPU cast hidden under the MXU
            w_ref[...],                        # already bf16 (cast once at init)
            preferred_element_type=jnp.float32,
        )
        if nk == 1:
            # No reduction axis: store directly (no accumulator round-trip).
            o_ref[...] = part
        else:
            # Output block is resident across the k axis (index_map ignores k):
            # use it as the f32 accumulator (output dtype is already f32).
            @pl.when(pl.program_id(1) == 0)
            def _():
                o_ref[...] = jnp.zeros_like(o_ref)

            o_ref[...] += part

    return kernel


def _vmem_budget():
    """Generation-aware VMEM numbers: (tile budget, vmem_limit_bytes).

    ~90 MiB budget / ~102 MiB limit on 128-MiB parts (v5e/v6e),
    ~45 MiB budget / ~51 MiB limit on v7x's 64-MiB VMEM.
    """
    try:
        phys = int(pltpu.get_tpu_info().vmem_capacity_bytes)
    except Exception:
        phys = 64 * 1024 * 1024   # v7x per-TensorCore size: safe everywhere
    return int(phys * 0.70), int(phys * 0.80)


def _choose_tiles(bc, wh, m_pad, rhs_itemsize, budget_bytes, tm_cap=1024):
    """Pick (row tile TM, K tile TK) against the VMEM budget.

    VMEM accounting assumes default double buffering for every operand:
    2 f32 lhs tiles (TM, TK) + 2 weight tiles (TK, m_pad) + 2 f32 out tiles
    (TM, m_pad).  The constant-index weight block only ever needs ONE buffer
    (pl.Buffered(1) would reclaim it); it is deliberately counted twice here so
    the budget stays safe under the default double-buffered pipeline.
    """
    bc8 = _round_up(bc, 8)
    # Row-tile ceiling: never exceed the rows available, and keep >= 2 row
    # tiles (so v7x can shard the "parallel" axis across its 2 TensorCores)
    # whenever BC is large enough to split.
    row_cap = bc8 if bc <= 8 else min(bc8, _round_up(pl.cdiv(bc, 2), 8))
    row_cap = min(row_cap, tm_cap)

    def tm_for(tk):
        w_bytes = 2 * tk * m_pad * rhs_itemsize        # double-buffered weight
        per_row = 2 * 4 * (tk + m_pad)                 # double-buffered f32 lhs + out
        cap = (budget_bytes - w_bytes) // per_row
        tm = int(min(row_cap, cap))
        tm = (tm // 8) * 8
        return tm if tm >= 8 else 0

    target_tm = min(256, row_cap)
    # Candidate K tiles: full WH first (no reduction axis), else multiple-of-128
    # divisors of WH, largest first.
    cands = [wh] + [d for d in range((wh // 128) * 128, 127, -128)
                    if d != wh and wh % d == 0]
    for tk in cands:
        tm = tm_for(tk)
        if tm >= target_tm:
            return tm, tk
    # Fall back: smallest candidate (max VMEM headroom), whatever TM it allows.
    tk = cands[-1]
    tm = tm_for(tk)
    return (tm if tm else 8), tk


def prepare_sensing_matrix(weight_m_wh):
    """One-time init: transpose s.weight (m, WH) -> (WH, m), pad m up to a
    lane-dense multiple of 128, and cast to bf16 (halves weight HBM traffic and
    VMEM residency; the matmul still accumulates in f32)."""
    m, wh = weight_m_wh.shape
    m_pad = _round_up(max(m, 128), 128)
    rhs = jnp.zeros((wh, m_pad), dtype=jnp.float32)
    rhs = rhs.at[:, :m].set(jnp.asarray(weight_m_wh, jnp.float32).T)
    return rhs.astype(jnp.bfloat16), m


@functools.partial(jax.jit, static_argnums=(2,))
def random_sensing_forward(x_nchw, rhs_wh_mpad, m):
    """x_nchw: (B, C, H, W) float32; rhs_wh_mpad: (WH, m_pad) bf16 from
    prepare_sensing_matrix; m: true number of measurements. Returns (B, C, m)."""
    B, C, H, W = x_nchw.shape
    WH = H * W
    wh_r, m_pad = rhs_wh_mpad.shape
    assert wh_r == WH, "sensing matrix / image size mismatch"
    BC = B * C

    budget, vmem_limit = _vmem_budget()
    tm, tk = _choose_tiles(BC, WH, m_pad, rhs_wh_mpad.dtype.itemsize, budget)
    nk = WH // tk
    grid = (pl.cdiv(BC, tm), nk)        # partial last row block handled by Pallas

    # Layout glue only: each (b, c) image becomes one row (free reshape, no pad).
    lhs = x_nchw.astype(jnp.float32).reshape(BC, WH)

    cost = pl.CostEstimate(
        flops=2 * BC * WH * m_pad,
        transcendentals=0,
        bytes_accessed=4 * BC * WH
        + WH * m_pad * rhs_wh_mpad.dtype.itemsize
        + 4 * BC * m_pad,
    )

    out2d = pl.pallas_call(
        _make_sensing_kernel(nk),
        out_shape=jax.ShapeDtypeStruct((BC, m_pad), jnp.float32),
        grid=grid,
        in_specs=[
            pl.BlockSpec((tm, tk), lambda i, k: (i, k)),      # row tile of images
            pl.BlockSpec((tk, m_pad), lambda i, k: (k, 0)),   # (resident) weight tile
        ],
        out_specs=pl.BlockSpec((tm, m_pad), lambda i, k: (i, 0)),
        compiler_params=pltpu.CompilerParams(
            dimension_semantics=("parallel", "arbitrary"),    # megacore on v7x
            vmem_limit_bytes=vmem_limit,
        ),
        cost_estimate=cost,
    )(lhs, rhs_wh_mpad)

    # Drop lane padding only when needed; matches torch.cat(ms,1).view(-1, C, m).
    if m != m_pad:
        out2d = out2d[:, :m]
    return out2d.reshape(B, C, m)


def make_sensing_weight(m, width, height, seed=0):
    """Deterministic stand-in for orth(np.random.normal(size=(WH, WH)))[:m]."""
    # TODO(synk): scipy.linalg.orth is host-side init, not part of the forward;
    # QR of a Gaussian matrix gives an equivalent orthonormal random projection.
    WH = width * height
    rng = np.random.default_rng(seed)
    a = rng.normal(size=(WH, WH)).astype(np.float32)
    q, _ = np.linalg.qr(a)
    return jnp.asarray(q[:m], dtype=jnp.float32)             # (m, WH) = s.weight


if __name__ == "__main__":
    # Small shapes consistent with the module: batch=2, channel=4, 16x16, m=64.
    B, C, H, W = 2, 4, 16, 16
    m = 64

    key = jax.random.PRNGKey(0)
    x = jax.random.normal(key, (B, C, H, W), dtype=jnp.float32)

    weight = make_sensing_weight(m, W, H, seed=0)             # (m, W*H) = s.weight
    rhs_padded, m_true = prepare_sensing_matrix(weight)       # one-time init

    out = random_sensing_forward(x, rhs_padded, m_true)
    out = jax.block_until_ready(out)

    # Reference check (plain JAX, f32) of the exact forward semantics.  The
    # kernel uses bf16 operands with f32 accumulation, hence ~1e-2-level tol.
    ref = jnp.einsum("bcp,mp->bcm", x.reshape(B, C, H * W), weight)
    assert out.shape == (B, C, m)
    assert np.allclose(np.asarray(out), np.asarray(ref), rtol=5e-2, atol=5e-2), \
        "Pallas kernel mismatch vs reference"

    print("KERNEL_OK")
</pallas_src>

<mosaic_0001>
module attributes {stable_mosaic.version = 11 : i64} {
  func.func @kernel(%arg0: i32, %arg1: i32, %arg2: memref<8x256xf32, #tpu.memory_space<vmem>>, %arg3: memref<256x128xbf16, #tpu.memory_space<vmem>>, %arg4: memref<8x128xf32, #tpu.memory_space<vmem>>) attributes {dimension_semantics = [#tpu.dimension_semantics<parallel>, #tpu.dimension_semantics<arbitrary>], iteration_bounds = array<i64: 1, 1>, scalar_prefetch = 0 : i64, scratch_operands = 0 : i64, tpu.core_type = #tpu.core_type<tc>, window_params = [{transform_indices = @transform_0, window_bounds = array<i64: 8, 256>}, {transform_indices = @transform_1, window_bounds = array<i64: 256, 128>}, {transform_indices = @transform_2, window_bounds = array<i64: 8, 128>}]} {
    %c0 = arith.constant 0 : index
    %c0_0 = arith.constant 0 : index
    %0 = vector.load %arg2[%c0, %c0_0] : memref<8x256xf32, #tpu.memory_space<vmem>>, vector<8x256xf32>
    %1 = arith.truncf %0 : vector<8x256xf32> to vector<8x256xbf16>
    %c0_1 = arith.constant 0 : index
    %c0_2 = arith.constant 0 : index
    %2 = vector.load %arg3[%c0_1, %c0_2] : memref<256x128xbf16, #tpu.memory_space<vmem>>, vector<256x128xbf16>
    %cst = arith.constant dense<0.000000e+00> : vector<8x128xf32>
    %3 = tpu.matmul %1, %2, %cst {dimension_numbers = #tpu.dot_dimension_numbers<[1], [0], [0], [1], [0, 0, 1, 1], [], []>} : vector<8x256xbf16>, vector<256x128xbf16>, vector<8x128xf32> -> vector<8x128xf32>
    %c0_3 = arith.constant 0 : index
    %c0_4 = arith.constant 0 : index
    %4 = vector.load %arg4[%c0_3, %c0_4] : memref<8x128xf32, #tpu.memory_space<vmem>>, vector<8x128xf32>
    tpu.vector_store %arg4[%c0_3, %c0_4], %3 {strides = array<i32>} : memref<8x128xf32, #tpu.memory_space<vmem>>, vector<8x128xf32>,
    return
  }
  func.func @transform_0(%arg0: i32, %arg1: i32) -> (i32, i32) {
    %c0_i32 = arith.constant 0 : i32
    return %arg0, %arg1 : i32, i32
  }
  func.func @transform_1(%arg0: i32, %arg1: i32) -> (i32, i32) {
    %c0_i32 = arith.constant 0 : i32
    %c0_i32_0 = arith.constant 0 : i32
    return %arg1, %c0_i32 : i32, i32
  }
  func.func @transform_2(%arg0: i32, %arg1: i32) -> (i32, i32) {
    %c0_i32 = arith.constant 0 : i32
    %c0_i32_0 = arith.constant 0 : i32
    return %arg0, %c0_i32 : i32, i32
  }
}

</mosaic_0001>

<llo_original>
// kernel: random_sensing_forward.1
$region0: #{random_sensing_forward.1}
  #allocation0 [shape = 'u32[]', space=smem, size = 0x4, offset = 0x4, fixed_abs, tag = 'smem constant byte address 0x4 - core index']
  #allocation1 [shape = 'u32[72,128]{1,0:T(1,128)}', space=vmem, size = 0x9000, scoped, tag = 'internal scratch']
  %s0 = inlined_call_operand.vmem [shape: f32[8,256], index: 0, kind: input, shape index: {}]
  %s1 = inlined_call_operand.vmem [shape: bf16[256,128], index: 1, kind: input, shape index: {}]
  %s2 = inlined_call_operand.hbm [shape: f32[8,128], index: 2, kind: output, shape index: {}]
  %s3 = sld [smem:[#allocation0]]
  $region18: #{random_sensing_forward.1} parent=0
    _
  %s5 = ssub.s32 1, %s3
  %s6 = scalar_select 0, %s5, %s3
  $region1: #{random_sensing_forward.1} parent=0
    #allocation2 [shape = 'u8[4096]{0}', space=vmem, size = 0x1000, scoped, tag = 'output window, operand 0, single buffered']
    #allocation3 [shape = 's32[1]{0}', space=sflag, size = 0x4, scoped, tag = 'scoped memory for random_sensing_forward.1']
    %7 = vsyncpa [#allocation3], 0
    // Predicated region
    $region2: #{random_sensing_forward.1} parent=1 // pred_check
      _
    $region3: #{random_sensing_forward.1} parent=1 // pred_check_branch
      %9 = sbr.rel (0) target = $region5
    $region4: #{random_sensing_forward.1} parent=1 // pred_region
      _
    $region5: #{random_sensing_forward.1} parent=1 // pred_fallthru
      _
    // Predicated region
    $region6: #{random_sensing_forward.1} parent=1 // pred_check
      _
    $region7: #{random_sensing_forward.1} parent=1 // pred_check_branch
      %11 = sbr.rel (0) target = $region9
    $region8: #{random_sensing_forward.1} parent=1 // pred_region
      _
    $region9: #{random_sensing_forward.1} parent=1 // pred_fallthru
      _
    %v12 = vld [vmem:[%s0] sm:$0xff]
    %v13 = vld [vmem:[%s0 + $0x8] sm:$0xff]
    %v14 = vpack.c.bf16 %v12, %v12
    %v15 = vpack.c.bf16 %v13, %v13
    %v16 = vld [vmem:[%s1] sm:$0xf]
    %v17 = vld [vmem:[%s1 + $0x4] sm:$0xf]
    %v18 = vld [vmem:[%s1 + $0x8] sm:$0xf]
    %v19 = vld [vmem:[%s1 + $0xc] sm:$0xf]
    %v20 = vld [vmem:[%s1 + $0x10] sm:$0xf]
    %v21 = vld [vmem:[%s1 + $0x14] sm:$0xf]
    %v22 = vld [vmem:[%s1 + $0x18] sm:$0xf]
    %v23 = vld [vmem:[%s1 + $0x1c] sm:$0xf]
    %v24 = vld [vmem:[%s1 + $0x20] sm:$0xf]
    %v25 = vld [vmem:[%s1 + $0x24] sm:$0xf]
    %v26 = vld [vmem:[%s1 + $0x28] sm:$0xf]
    %v27 = vld [vmem:[%s1 + $0x2c] sm:$0xf]
    %v28 = vld [vmem:[%s1 + $0x30] sm:$0xf]
    %v29 = vld [vmem:[%s1 + $0x34] sm:$0xf]
    %v30 = vld [vmem:[%s1 + $0x38] sm:$0xf]
    %v31 = vld [vmem:[%s1 + $0x3c] sm:$0xf]
    %v32 = vld [vmem:[%s1 + $0x40] sm:$0xf]
    %v33 = vld [vmem:[%s1 + $0x44] sm:$0xf]
    %v34 = vld [vmem:[%s1 + $0x48] sm:$0xf]
    %v35 = vld [vmem:[%s1 + $0x4c] sm:$0xf]
    %v36 = vld [vmem:[%s1 + $0x50] sm:$0xf]
    %v37 = vld [vmem:[%s1 + $0x54] sm:$0xf]
    %v38 = vld [vmem:[%s1 + $0x58] sm:$0xf]
    %v39 = vld [vmem:[%s1 + $0x5c] sm:$0xf]
    %v40 = vld [vmem:[%s1 + $0x60] sm:$0xf]
    %v41 = vld [vmem:[%s1 + $0x64] sm:$0xf]
    %v42 = vld [vmem:[%s1 + $0x68] sm:$0xf]
    %v43 = vld [vmem:[%s1 + $0x6c] sm:$0xf]
    %v44 = vld [vmem:[%s1 + $0x70] sm:$0xf]
    %v45 = vld [vmem:[%s1 + $0x74] sm:$0xf]
    %v46 = vld [vmem:[%s1 + $0x78] sm:$0xf]
    %v47 = vld [vmem:[%s1 + $0x7c] sm:$0xf]
    %v80 = vunpack.c.l.b16 %v16
    %v81 = vunpack.c.l.b16 %v17
    %v82 = vunpack.c.l.b16 %v18
    %v83 = vunpack.c.l.b16 %v19
    %v84 = vunpack.c.l.b16 %v20
    %v85 = vunpack.c.l.b16 %v21
    %v86 = vunpack.c.l.b16 %v22
    %v87 = vunpack.c.l.b16 %v23
    %v88 = vunpack.c.l.b16 %v24
    %v89 = vunpack.c.l.b16 %v25
    %v90 = vunpack.c.l.b16 %v26
    %v91 = vunpack.c.l.b16 %v27
    %v92 = vunpack.c.l.b16 %v28
    %v93 = vunpack.c.l.b16 %v29
    %v94 = vunpack.c.l.b16 %v30
    %v95 = vunpack.c.l.b16 %v31
    %v96 = vunpack.c.l.b16 %v32
    %v97 = vunpack.c.l.b16 %v33
    %v98 = vunpack.c.l.b16 %v34
    %v99 = vunpack.c.l.b16 %v35
    %v100 = vunpack.c.l.b16 %v36
    %v101 = vunpack.c.l.b16 %v37
    %v102 = vunpack.c.l.b16 %v38
    %v103 = vunpack.c.l.b16 %v39
    %v104 = vunpack.c.l.b16 %v40
    %v105 = vunpack.c.l.b16 %v41
    %v106 = vunpack.c.l.b16 %v42
    %v107 = vunpack.c.l.b16 %v43
    %v108 = vunpack.c.l.b16 %v44
    %v109 = vunpack.c.l.b16 %v45
    %v110 = vunpack.c.l.b16 %v46
    %v111 = vunpack.c.l.b16 %v47
    %v112 = vpack.c.b16 %v81, %v80
    %v113 = vpack.c.b16 %v83, %v82
    %v114 = vpack.c.b16 %v85, %v84
    %v115 = vpack.c.b16 %v87, %v86
    %v116 = vpack.c.b16 %v89, %v88
    %v117 = vpack.c.b16 %v91, %v90
    %v118 = vpack.c.b16 %v93, %v92
    %v119 = vpack.c.b16 %v95, %v94
    %v120 = vpack.c.b16 %v97, %v96
    %v121 = vpack.c.b16 %v99, %v98
    %v122 = vpack.c.b16 %v101, %v100
    %v123 = vpack.c.b16 %v103, %v102
    %v124 = vpack.c.b16 %v105, %v104
    %v125 = vpack.c.b16 %v107, %v106
    %v126 = vpack.c.b16 %v109, %v108
    %v127 = vpack.c.b16 %v111, %v110
    %144 = vmatpush.bf16.msra.mxu0 %v119
    %145 = vmatpush.bf16.msra.mxu0 %v118
    %146 = vmatpush.bf16.msra.mxu0 %v117
    %147 = vmatpush.bf16.msra.mxu0 %v116
    %148 = vmatpush.bf16.msra.mxu0 %v115
    %149 = vmatpush.bf16.msra.mxu0 %v114
    %150 = vmatpush.bf16.msra.mxu0 %v113
    %151 = vmatpush.bf16.msra.mxu0 %v112
    %152 = vmatmul.bf16.gmra.mxu0 %v14
    %v153 = vpop.f32.mrf.mxu0
    %v154 = vadd.f32 0.0, %v153
    %v155 = vpop.f32.mrf.mxu0
    %156 = vdwg.mxu0
    %157 = vmatpush.bf16.msra.mxu0 %v127
    %158 = vmatpush.bf16.msra.mxu0 %v126
    %159 = vmatpush.bf16.msra.mxu0 %v125
    %160 = vmatpush.bf16.msra.mxu0 %v124
    %161 = vmatpush.bf16.msra.mxu0 %v123
    %162 = vmatpush.bf16.msra.mxu0 %v122
    %163 = vmatpush.bf16.msra.mxu0 %v121
    %164 = vmatpush.bf16.msra.mxu0 %v120
    %165 = vmatmul.bf16.gmra.mxu0 %v15
    %v166 = vpop.f32.mrf.mxu0
    %v167 = vadd.f32 %v154, %v166
    %v168 = vpop.f32.mrf.mxu0
    %169 = vdwg.mxu0
    %170 = vst [vmem:[#allocation2] sm:$0xff] %v167
    // Predicated region
    $region10: #{random_sensing_forward.1} parent=1 // pred_check
      _
    $region11: #{random_sensing_forward.1} parent=1 // pred_check_branch
      %172 = sbr.rel (0) target = $region13
    $region12: #{random_sensing_forward.1} parent=1 // pred_region
      %174 = vsyncadd [#allocation3], 0
      %s176 = sshll.u32 [#allocation2], 4
      %s177 = int_to_ptr.vmem [resolvable:$true] %s176
      %s178 = sshll.u32 %s2, 4
      %s179 = int_to_ptr.hbm [resolvable:$true] %s178
      %181 = dma.vmem_to_hbm [thread:$0]  %s177, 128, %s179, [#allocation3]
    $region13: #{random_sensing_forward.1} parent=1 // pred_fallthru
      _
    // Predicated region
    $region14: #{random_sensing_forward.1} parent=1 // pred_check
      _
    $region15: #{random_sensing_forward.1} parent=1 // pred_check_branch
      %183 = sbr.rel (0) target = $region17
    $region16: #{random_sensing_forward.1} parent=1 // pred_region
      %185 = dma.done [#allocation3], 128
    $region17: #{random_sensing_forward.1} parent=1 // pred_fallthru
      _
    %186 = vsyncpa [#allocation3], 1

</llo_original>
